<compile_context>
chip_gen: v6e
topology: v6e:2x2x1
jax: 0.10.0
libtpu: 0.0.40
codegen_flags: <defaults>
</compile_context>

<pallas_src>
import functools

import jax
import jax.numpy as jnp
from jax import lax
from jax.experimental import pallas as pl
from jax.experimental.pallas import tpu as pltpu


# ----------------------------------------------------------------------------
# Fused kernel: LayerNorm + multi-head attention + output projection,
# one batch element per grid cell.
# ----------------------------------------------------------------------------
def _prenorm_attn_kernel(
    x_ref,       # (1, N, D)   input block
    g_ref,       # (1, D)      LayerNorm gamma
    b_ln_ref,    # (1, D)      LayerNorm beta
    wqkv_ref,    # (D, 3*inner)   q-columns pre-scaled by dim_head**-0.5
    wout_ref,    # (inner, D)
    bout_ref,    # (1, D)
    o_ref,       # (1, N, D)   output block (lane-dense, full D)
    *,
    heads,
    dim_head,
    eps,
    mxu_dtype,
):
    inner = heads * dim_head

    # ---- LayerNorm (f32 VPU math; PyTorch eps / biased variance) ----
    x = x_ref[0].astype(jnp.float32)                         # (N, D)
    mu = jnp.mean(x, axis=-1, keepdims=True)
    xc = x - mu
    var = jnp.mean(xc * xc, axis=-1, keepdims=True)
    xn = xc * lax.rsqrt(var + eps)
    xn = xn * g_ref[...].astype(jnp.float32) + b_ln_ref[...].astype(jnp.float32)

    # ---- QKV projection: one lane-dense MXU matmul (scale baked into w_qkv) ----
    qkv = jnp.dot(
        xn.astype(mxu_dtype), wqkv_ref[...],
        preferred_element_type=jnp.float32,
    )                                                         # (N, 3*inner) f32

    # ---- per-head attention (static unroll; H is small and static) ----
    head_outs = []
    for h in range(heads):
        lo = h * dim_head
        q = qkv[:, lo:lo + dim_head]                          # (N, Dh), scale included
        k = qkv[:, inner + lo:inner + lo + dim_head]          # (N, Dh)
        v = qkv[:, 2 * inner + lo:2 * inner + lo + dim_head]  # (N, Dh)

        # q @ k^T without an explicit transpose: contract Dh on both sides.
        dots = lax.dot_general(
            q.astype(mxu_dtype), k.astype(mxu_dtype),
            dimension_numbers=(((1,), (1,)), ((), ())),
            preferred_element_type=jnp.float32,
        )                                                     # (N, N) f32

        m = jnp.max(dots, axis=-1, keepdims=True)
        p = jnp.exp(dots - m)
        denom = jnp.sum(p, axis=-1, keepdims=True)
        attn = p * pl.reciprocal(denom, approx=True)          # EUP vrcp (free slot)

        head_outs.append(
            jnp.dot(attn.astype(mxu_dtype), v.astype(mxu_dtype),
                    preferred_element_type=jnp.float32)        # (N, Dh) f32
        )

    merged = jnp.concatenate(head_outs, axis=-1)              # (N, inner)

    # ---- output projection + bias; single lane-dense (N, D) store ----
    out = jnp.dot(merged.astype(mxu_dtype), wout_ref[...],
                  preferred_element_type=jnp.float32)
    out = out + bout_ref[...].astype(jnp.float32)
    o_ref[0] = out.astype(o_ref.dtype)


# ----------------------------------------------------------------------------
# Wrapper: mirrors PreNorm.forward(x) == fn(LayerNorm(x)) with fn = Attention,
# mask = None, dropout = identity (inference).
# ----------------------------------------------------------------------------
def prenorm_attention_forward(x, params, heads, dim_head, *,
                              mxu_dtype=jnp.bfloat16, eps=1e-5):
    B, N, D = x.shape
    inner = heads * dim_head
    scale = float(dim_head) ** (-0.5)

    # Fold the softmax scale into the q-columns of w_qkv (done once, host side).
    w_qkv = params["w_qkv"].astype(jnp.float32)
    w_qkv = w_qkv.at[:, :inner].multiply(scale).astype(mxu_dtype)
    w_out = params["w_out"].astype(mxu_dtype)

    gamma = params["ln_g"].reshape(1, D).astype(jnp.float32)
    beta = params["ln_b"].reshape(1, D).astype(jnp.float32)
    b_out = params["b_out"].reshape(1, D).astype(jnp.float32)

    kernel = functools.partial(
        _prenorm_attn_kernel,
        heads=heads, dim_head=dim_head, eps=eps, mxu_dtype=mxu_dtype,
    )

    def full_spec(shape):
        return pl.BlockSpec(shape, lambda b: (0, 0))

    return pl.pallas_call(
        kernel,
        out_shape=jax.ShapeDtypeStruct((B, N, D), x.dtype),
        grid=(B,),
        in_specs=[
            pl.BlockSpec((1, N, D), lambda b: (b, 0, 0)),   # x
            full_spec((1, D)),                              # LayerNorm gamma
            full_spec((1, D)),                              # LayerNorm beta
            full_spec((D, 3 * inner)),                      # w_qkv (scaled q cols)
            full_spec((inner, D)),                          # w_out
            full_spec((1, D)),                              # b_out
        ],
        out_specs=pl.BlockSpec((1, N, D), lambda b: (b, 0, 0)),
        compiler_params=pltpu.CompilerParams(
            dimension_semantics=("parallel",),              # shards batch over TCs
            vmem_limit_bytes=32 * 1024 * 1024,              # explicit; safe on v7x's 64 MiB VMEM
        ),
    )(x, gamma, beta, w_qkv, w_out, b_out)


# ----------------------------------------------------------------------------
# Pure-JAX f32 reference (PreNorm -> Attention, mask=None).
# ----------------------------------------------------------------------------
def reference_forward(x, params, heads, dim_head, eps=1e-5):
    B, N, D = x.shape
    inner = heads * dim_head
    scale = float(dim_head) ** (-0.5)

    mu = jnp.mean(x, axis=-1, keepdims=True)
    var = jnp.mean((x - mu) ** 2, axis=-1, keepdims=True)
    xn = (x - mu) / jnp.sqrt(var + eps) * params["ln_g"] + params["ln_b"]

    qkv = xn @ params["w_qkv"]
    qkv = qkv.reshape(B, N, 3, heads, dim_head)
    q = jnp.transpose(qkv[:, :, 0], (0, 2, 1, 3))
    k = jnp.transpose(qkv[:, :, 1], (0, 2, 1, 3))
    v = jnp.transpose(qkv[:, :, 2], (0, 2, 1, 3))
    dots = jnp.einsum("bhid,bhjd->bhij", q, k) * scale
    attn = jax.nn.softmax(dots, axis=-1)
    out = jnp.einsum("bhij,bhjd->bhid", attn, v)
    out = jnp.transpose(out, (0, 2, 1, 3)).reshape(B, N, inner)
    return out @ params["w_out"] + params["b_out"]


if __name__ == "__main__":
    # Small, module-consistent shapes.
    B, N, D = 2, 8, 32          # batch, seq len, embedding dim
    heads, dim_head = 4, 16     # inner_dim = 64
    inner = heads * dim_head

    key = jax.random.PRNGKey(0)
    k_x, k_qkv, k_wo, k_bo, k_g, k_b = jax.random.split(key, 6)

    x = jax.random.normal(k_x, (B, N, D), dtype=jnp.float32)
    params = {
        # nn.LayerNorm(dim): weight/bias (random so the LN path is really tested).
        "ln_g": 1.0 + 0.1 * jax.random.normal(k_g, (D,), dtype=jnp.float32),
        "ln_b": 0.1 * jax.random.normal(k_b, (D,), dtype=jnp.float32),
        # nn.Linear(dim, inner*3, bias=False): weight stored transposed (D, 3*inner).
        "w_qkv": jax.random.normal(k_qkv, (D, 3 * inner), dtype=jnp.float32) * 0.05,
        # nn.Linear(inner, dim): weight stored transposed (inner, D), plus bias.
        "w_out": jax.random.normal(k_wo, (inner, D), dtype=jnp.float32) * 0.05,
        "b_out": jax.random.normal(k_bo, (D,), dtype=jnp.float32) * 0.05,
    }

    y_ref = reference_forward(x, params, heads, dim_head)

    # f32-on-MXU path: tight check (approx reciprocal slightly relaxes tolerance).
    y_f32 = jax.block_until_ready(
        prenorm_attention_forward(x, params, heads, dim_head, mxu_dtype=jnp.float32)
    )
    assert y_f32.shape == (B, N, D)
    assert jnp.allclose(y_f32, y_ref, atol=5e-3, rtol=5e-3), "f32 path mismatch"

    # bf16-on-MXU path (default, for v6e/v7x throughput): looser tolerance.
    y_bf16 = jax.block_until_ready(
        prenorm_attention_forward(x, params, heads, dim_head, mxu_dtype=jnp.bfloat16)
    )
    assert y_bf16.shape == (B, N, D)
    assert jnp.allclose(y_bf16, y_ref, atol=3e-2, rtol=3e-2), "bf16 path mismatch"

    print("KERNEL_OK")
</pallas_src>

<mosaic_0001>
module attributes {stable_mosaic.version = 11 : i64} {
  func.func @_prenorm_attn_kernel(%arg0: i32, %arg1: memref<1x8x32xf32, #tpu.memory_space<vmem>>, %arg2: memref<1x32xf32, #tpu.memory_space<vmem>>, %arg3: memref<1x32xf32, #tpu.memory_space<vmem>>, %arg4: memref<32x192xf32, #tpu.memory_space<vmem>>, %arg5: memref<64x32xf32, #tpu.memory_space<vmem>>, %arg6: memref<1x32xf32, #tpu.memory_space<vmem>>, %arg7: memref<1x8x32xf32, #tpu.memory_space<vmem>>) attributes {dimension_semantics = [#tpu.dimension_semantics<parallel>], iteration_bounds = array<i64: 2>, scalar_prefetch = 0 : i64, scratch_operands = 0 : i64, tpu.core_type = #tpu.core_type<tc>, window_params = [{transform_indices = @transform_0, window_bounds = array<i64: 1, 8, 32>}, {pipeline_mode = #tpu.pipeline_mode<synchronous>, transform_indices = @transform_1, window_bounds = array<i64: 1, 32>}, {pipeline_mode = #tpu.pipeline_mode<synchronous>, transform_indices = @transform_2, window_bounds = array<i64: 1, 32>}, {pipeline_mode = #tpu.pipeline_mode<synchronous>, transform_indices = @transform_3, window_bounds = array<i64: 32, 192>}, {pipeline_mode = #tpu.pipeline_mode<synchronous>, transform_indices = @transform_4, window_bounds = array<i64: 64, 32>}, {pipeline_mode = #tpu.pipeline_mode<synchronous>, transform_indices = @transform_5, window_bounds = array<i64: 1, 32>}, {transform_indices = @transform_6, window_bounds = array<i64: 1, 8, 32>}]} {
    %c0 = arith.constant 0 : index
    %c0_0 = arith.constant 0 : index
    %c0_1 = arith.constant 0 : index
    %0 = vector.load %arg1[%c0, %c0_0, %c0_1] : memref<1x8x32xf32, #tpu.memory_space<vmem>>, vector<1x8x32xf32>
    %1 = vector.shape_cast %0 : vector<1x8x32xf32> to vector<8x32xf32>
    %cst = arith.constant dense<0.000000e+00> : vector<8xf32>
    %2 = vector.multi_reduction <add>, %1, %cst [1] : vector<8x32xf32> to vector<8xf32>
    %3 = vector.shape_cast %2 : vector<8xf32> to vector<8x1xf32>
    %cst_2 = arith.constant 3.200000e+01 : f32
    %4 = vector.broadcast %cst_2 : f32 to vector<8x1xf32>
    %5 = arith.divf %3, %4 : vector<8x1xf32>
    %6 = vector.broadcast %5 : vector<8x1xf32> to vector<8x32xf32>
    %7 = arith.subf %1, %6 : vector<8x32xf32>
    %8 = arith.mulf %7, %7 : vector<8x32xf32>
    %cst_3 = arith.constant dense<0.000000e+00> : vector<8xf32>
    %9 = vector.multi_reduction <add>, %8, %cst_3 [1] : vector<8x32xf32> to vector<8xf32>
    %10 = vector.shape_cast %9 : vector<8xf32> to vector<8x1xf32>
    %cst_4 = arith.constant 3.200000e+01 : f32
    %11 = vector.broadcast %cst_4 : f32 to vector<8x1xf32>
    %12 = arith.divf %10, %11 : vector<8x1xf32>
    %cst_5 = arith.constant 9.99999974E-6 : f32
    %13 = vector.broadcast %cst_5 : f32 to vector<8x1xf32>
    %14 = arith.addf %12, %13 : vector<8x1xf32>
    %15 = math.rsqrt %14 : vector<8x1xf32>
    %16 = vector.broadcast %15 : vector<8x1xf32> to vector<8x32xf32>
    %17 = arith.mulf %7, %16 : vector<8x32xf32>
    %c0_6 = arith.constant 0 : index
    %c0_7 = arith.constant 0 : index
    %18 = vector.load %arg2[%c0_6, %c0_7] : memref<1x32xf32, #tpu.memory_space<vmem>>, vector<1x32xf32>
    %19 = vector.broadcast %18 : vector<1x32xf32> to vector<8x32xf32>
    %20 = arith.mulf %17, %19 : vector<8x32xf32>
    %c0_8 = arith.constant 0 : index
    %c0_9 = arith.constant 0 : index
    %21 = vector.load %arg3[%c0_8, %c0_9] : memref<1x32xf32, #tpu.memory_space<vmem>>, vector<1x32xf32>
    %22 = vector.broadcast %21 : vector<1x32xf32> to vector<8x32xf32>
    %23 = arith.addf %20, %22 : vector<8x32xf32>
    %c0_10 = arith.constant 0 : index
    %c0_11 = arith.constant 0 : index
    %24 = vector.load %arg4[%c0_10, %c0_11] : memref<32x192xf32, #tpu.memory_space<vmem>>, vector<32x192xf32>
    %cst_12 = arith.constant dense<0.000000e+00> : vector<8x192xf32>
    %25 = tpu.matmul %23, %24, %cst_12 {dimension_numbers = #tpu.dot_dimension_numbers<[1], [0], [0], [1], [0, 0, 1, 1], [], []>} : vector<8x32xf32>, vector<32x192xf32>, vector<8x192xf32> -> vector<8x192xf32>
    %26 = vector.extract_strided_slice %25 {offsets = [0, 0], sizes = [8, 16], strides = [1, 1]} : vector<8x192xf32> to vector<8x16xf32>
    %27 = vector.extract_strided_slice %25 {offsets = [0, 64], sizes = [8, 16], strides = [1, 1]} : vector<8x192xf32> to vector<8x16xf32>
    %28 = vector.extract_strided_slice %25 {offsets = [0, 128], sizes = [8, 16], strides = [1, 1]} : vector<8x192xf32> to vector<8x16xf32>
    %cst_13 = arith.constant dense<0.000000e+00> : vector<8x8xf32>
    %29 = tpu.matmul %26, %27, %cst_13 {dimension_numbers = #tpu.dot_dimension_numbers<[1], [1], [0], [0], [0, 0, 1, 0], [], []>} : vector<8x16xf32>, vector<8x16xf32>, vector<8x8xf32> -> vector<8x8xf32>
    %cst_14 = arith.constant dense<0xFF800000> : vector<8xf32>
    %30 = vector.multi_reduction <maximumf>, %29, %cst_14 [1] : vector<8x8xf32> to vector<8xf32>
    %31 = vector.shape_cast %30 : vector<8xf32> to vector<8x1xf32>
    %32 = vector.broadcast %31 : vector<8x1xf32> to vector<8x8xf32>
    %33 = arith.subf %29, %32 : vector<8x8xf32>
    %34 = math.exp %33 : vector<8x8xf32>
    %cst_15 = arith.constant dense<0.000000e+00> : vector<8xf32>
    %35 = vector.multi_reduction <add>, %34, %cst_15 [1] : vector<8x8xf32> to vector<8xf32>
    %36 = vector.shape_cast %35 : vector<8xf32> to vector<8x1xf32>
    %37 = tpu.reciprocal %36 {approx = true} : vector<8x1xf32> -> vector<8x1xf32>
    %38 = vector.broadcast %37 : vector<8x1xf32> to vector<8x8xf32>
    %39 = arith.mulf %34, %38 : vector<8x8xf32>
    %cst_16 = arith.constant dense<0.000000e+00> : vector<8x16xf32>
    %40 = tpu.matmul %39, %28, %cst_16 {dimension_numbers = #tpu.dot_dimension_numbers<[1], [0], [0], [1], [0, 0, 1, 1], [], []>} : vector<8x8xf32>, vector<8x16xf32>, vector<8x16xf32> -> vector<8x16xf32>
    %41 = vector.extract_strided_slice %25 {offsets = [0, 16], sizes = [8, 16], strides = [1, 1]} : vector<8x192xf32> to vector<8x16xf32>
    %42 = vector.extract_strided_slice %25 {offsets = [0, 80], sizes = [8, 16], strides = [1, 1]} : vector<8x192xf32> to vector<8x16xf32>
    %43 = vector.extract_strided_slice %25 {offsets = [0, 144], sizes = [8, 16], strides = [1, 1]} : vector<8x192xf32> to vector<8x16xf32>
    %cst_17 = arith.constant dense<0.000000e+00> : vector<8x8xf32>
    %44 = tpu.matmul %41, %42, %cst_17 {dimension_numbers = #tpu.dot_dimension_numbers<[1], [1], [0], [0], [0, 0, 1, 0], [], []>} : vector<8x16xf32>, vector<8x16xf32>, vector<8x8xf32> -> vector<8x8xf32>
    %cst_18 = arith.constant dense<0xFF800000> : vector<8xf32>
    %45 = vector.multi_reduction <maximumf>, %44, %cst_18 [1] : vector<8x8xf32> to vector<8xf32>
    %46 = vector.shape_cast %45 : vector<8xf32> to vector<8x1xf32>
    %47 = vector.broadcast %46 : vector<8x1xf32> to vector<8x8xf32>
    %48 = arith.subf %44, %47 : vector<8x8xf32>
    %49 = math.exp %48 : vector<8x8xf32>
    %cst_19 = arith.constant dense<0.000000e+00> : vector<8xf32>
    %50 = vector.multi_reduction <add>, %49, %cst_19 [1] : vector<8x8xf32> to vector<8xf32>
    %51 = vector.shape_cast %50 : vector<8xf32> to vector<8x1xf32>
    %52 = tpu.reciprocal %51 {approx = true} : vector<8x1xf32> -> vector<8x1xf32>
    %53 = vector.broadcast %52 : vector<8x1xf32> to vector<8x8xf32>
    %54 = arith.mulf %49, %53 : vector<8x8xf32>
    %cst_20 = arith.constant dense<0.000000e+00> : vector<8x16xf32>
    %55 = tpu.matmul %54, %43, %cst_20 {dimension_numbers = #tpu.dot_dimension_numbers<[1], [0], [0], [1], [0, 0, 1, 1], [], []>} : vector<8x8xf32>, vector<8x16xf32>, vector<8x16xf32> -> vector<8x16xf32>
    %56 = vector.extract_strided_slice %25 {offsets = [0, 32], sizes = [8, 16], strides = [1, 1]} : vector<8x192xf32> to vector<8x16xf32>
    %57 = vector.extract_strided_slice %25 {offsets = [0, 96], sizes = [8, 16], strides = [1, 1]} : vector<8x192xf32> to vector<8x16xf32>
    %58 = vector.extract_strided_slice %25 {offsets = [0, 160], sizes = [8, 16], strides = [1, 1]} : vector<8x192xf32> to vector<8x16xf32>
    %cst_21 = arith.constant dense<0.000000e+00> : vector<8x8xf32>
    %59 = tpu.matmul %56, %57, %cst_21 {dimension_numbers = #tpu.dot_dimension_numbers<[1], [1], [0], [0], [0, 0, 1, 0], [], []>} : vector<8x16xf32>, vector<8x16xf32>, vector<8x8xf32> -> vector<8x8xf32>
    %cst_22 = arith.constant dense<0xFF800000> : vector<8xf32>
    %60 = vector.multi_reduction <maximumf>, %59, %cst_22 [1] : vector<8x8xf32> to vector<8xf32>
    %61 = vector.shape_cast %60 : vector<8xf32> to vector<8x1xf32>
    %62 = vector.broadcast %61 : vector<8x1xf32> to vector<8x8xf32>
    %63 = arith.subf %59, %62 : vector<8x8xf32>
    %64 = math.exp %63 : vector<8x8xf32>
    %cst_23 = arith.constant dense<0.000000e+00> : vector<8xf32>
    %65 = vector.multi_reduction <add>, %64, %cst_23 [1] : vector<8x8xf32> to vector<8xf32>
    %66 = vector.shape_cast %65 : vector<8xf32> to vector<8x1xf32>
    %67 = tpu.reciprocal %66 {approx = true} : vector<8x1xf32> -> vector<8x1xf32>
    %68 = vector.broadcast %67 : vector<8x1xf32> to vector<8x8xf32>
    %69 = arith.mulf %64, %68 : vector<8x8xf32>
    %cst_24 = arith.constant dense<0.000000e+00> : vector<8x16xf32>
    %70 = tpu.matmul %69, %58, %cst_24 {dimension_numbers = #tpu.dot_dimension_numbers<[1], [0], [0], [1], [0, 0, 1, 1], [], []>} : vector<8x8xf32>, vector<8x16xf32>, vector<8x16xf32> -> vector<8x16xf32>
    %71 = vector.extract_strided_slice %25 {offsets = [0, 48], sizes = [8, 16], strides = [1, 1]} : vector<8x192xf32> to vector<8x16xf32>
    %72 = vector.extract_strided_slice %25 {offsets = [0, 112], sizes = [8, 16], strides = [1, 1]} : vector<8x192xf32> to vector<8x16xf32>
    %73 = vector.extract_strided_slice %25 {offsets = [0, 176], sizes = [8, 16], strides = [1, 1]} : vector<8x192xf32> to vector<8x16xf32>
    %cst_25 = arith.constant dense<0.000000e+00> : vector<8x8xf32>
    %74 = tpu.matmul %71, %72, %cst_25 {dimension_numbers = #tpu.dot_dimension_numbers<[1], [1], [0], [0], [0, 0, 1, 0], [], []>} : vector<8x16xf32>, vector<8x16xf32>, vector<8x8xf32> -> vector<8x8xf32>
    %cst_26 = arith.constant dense<0xFF800000> : vector<8xf32>
    %75 = vector.multi_reduction <maximumf>, %74, %cst_26 [1] : vector<8x8xf32> to vector<8xf32>
    %76 = vector.shape_cast %75 : vector<8xf32> to vector<8x1xf32>
    %77 = vector.broadcast %76 : vector<8x1xf32> to vector<8x8xf32>
    %78 = arith.subf %74, %77 : vector<8x8xf32>
    %79 = math.exp %78 : vector<8x8xf32>
    %cst_27 = arith.constant dense<0.000000e+00> : vector<8xf32>
    %80 = vector.multi_reduction <add>, %79, %cst_27 [1] : vector<8x8xf32> to vector<8xf32>
    %81 = vector.shape_cast %80 : vector<8xf32> to vector<8x1xf32>
    %82 = tpu.reciprocal %81 {approx = true} : vector<8x1xf32> -> vector<8x1xf32>
    %83 = vector.broadcast %82 : vector<8x1xf32> to vector<8x8xf32>
    %84 = arith.mulf %79, %83 : vector<8x8xf32>
    %cst_28 = arith.constant dense<0.000000e+00> : vector<8x16xf32>
    %85 = tpu.matmul %84, %73, %cst_28 {dimension_numbers = #tpu.dot_dimension_numbers<[1], [0], [0], [1], [0, 0, 1, 1], [], []>} : vector<8x8xf32>, vector<8x16xf32>, vector<8x16xf32> -> vector<8x16xf32>
    %86 = tpu.concatenate %40, %55, %70, %85 in 1 : vector<8x16xf32>, vector<8x16xf32>, vector<8x16xf32>, vector<8x16xf32> -> vector<8x64xf32>
    %c0_29 = arith.constant 0 : index
    %c0_30 = arith.constant 0 : index
    %87 = vector.load %arg5[%c0_29, %c0_30] : memref<64x32xf32, #tpu.memory_space<vmem>>, vector<64x32xf32>
    %cst_31 = arith.constant dense<0.000000e+00> : vector<8x32xf32>
    %88 = tpu.matmul %86, %87, %cst_31 {dimension_numbers = #tpu.dot_dimension_numbers<[1], [0], [0], [1], [0, 0, 1, 1], [], []>} : vector<8x64xf32>, vector<64x32xf32>, vector<8x32xf32> -> vector<8x32xf32>
    %c0_32 = arith.constant 0 : index
    %c0_33 = arith.constant 0 : index
    %89 = vector.load %arg6[%c0_32, %c0_33] : memref<1x32xf32, #tpu.memory_space<vmem>>, vector<1x32xf32>
    %90 = vector.broadcast %89 : vector<1x32xf32> to vector<8x32xf32>
    %91 = arith.addf %88, %90 : vector<8x32xf32>
    %c0_34 = arith.constant 0 : index
    %c0_35 = arith.constant 0 : index
    %c0_36 = arith.constant 0 : index
    %92 = vector.load %arg7[%c0_34, %c0_35, %c0_36] : memref<1x8x32xf32, #tpu.memory_space<vmem>>, vector<1x8x32xf32>
    %93 = vector.shape_cast %92 : vector<1x8x32xf32> to vector<8x32xf32>
    %94 = vector.shape_cast %91 : vector<8x32xf32> to vector<1x8x32xf32>
    tpu.vector_store %arg7[%c0_34, %c0_35, %c0_36], %94 {strides = array<i32>} : memref<1x8x32xf32, #tpu.memory_space<vmem>>, vector<1x8x32xf32>,
    return
  }
  func.func @transform_0(%arg0: i32) -> (i32, i32, i32) {
    %c0_i32 = arith.constant 0 : i32
    %c0_i32_0 = arith.constant 0 : i32
    %c0_i32_1 = arith.constant 0 : i32
    return %arg0, %c0_i32, %c0_i32_0 : i32, i32, i32
  }
  func.func @transform_1(%arg0: i32) -> (i32, i32) {
    %c0_i32 = arith.constant 0 : i32
    %c0_i32_0 = arith.constant 0 : i32
    %c0_i32_1 = arith.constant 0 : i32
    return %c0_i32, %c0_i32_0 : i32, i32
  }
  func.func @transform_2(%arg0: i32) -> (i32, i32) {
    %c0_i32 = arith.constant 0 : i32
    %c0_i32_0 = arith.constant 0 : i32
    %c0_i32_1 = arith.constant 0 : i32
    return %c0_i32, %c0_i32_0 : i32, i32
  }
  func.func @transform_3(%arg0: i32) -> (i32, i32) {
    %c0_i32 = arith.constant 0 : i32
    %c0_i32_0 = arith.constant 0 : i32
    %c0_i32_1 = arith.constant 0 : i32
    return %c0_i32, %c0_i32_0 : i32, i32
  }
  func.func @transform_4(%arg0: i32) -> (i32, i32) {
    %c0_i32 = arith.constant 0 : i32
    %c0_i32_0 = arith.constant 0 : i32
    %c0_i32_1 = arith.constant 0 : i32
    return %c0_i32, %c0_i32_0 : i32, i32
  }
  func.func @transform_5(%arg0: i32) -> (i32, i32) {
    %c0_i32 = arith.constant 0 : i32
    %c0_i32_0 = arith.constant 0 : i32
    %c0_i32_1 = arith.constant 0 : i32
    return %c0_i32, %c0_i32_0 : i32, i32
  }
  func.func @transform_6(%arg0: i32) -> (i32, i32, i32) {
    %c0_i32 = arith.constant 0 : i32
    %c0_i32_0 = arith.constant 0 : i32
    %c0_i32_1 = arith.constant 0 : i32
    return %arg0, %c0_i32, %c0_i32_0 : i32, i32, i32
  }
}

</mosaic_0001>

<llo_original>
// kernel: tpu_custom_call.1
$region0: #{tpu_custom_call.1}
  #allocation0 [shape = 'u32[]', space=smem, size = 0x4, offset = 0x4, fixed_abs, tag = 'smem constant byte address 0x4 - core index']
  #allocation1 [shape = 'u32[144,128]{1,0:T(1,128)}', space=vmem, size = 0x12000, scoped, tag = 'internal scratch']
  %s0 = inlined_call_operand.vmem [shape: f32[2,8,32], index: 0, kind: input, shape index: {}]
  %s1 = inlined_call_operand.vmem [shape: f32[1,32], index: 1, kind: input, shape index: {}]
  %s2 = inlined_call_operand.vmem [shape: f32[1,32], index: 2, kind: input, shape index: {}]
  %s3 = inlined_call_operand.vmem [shape: f32[32,192], index: 3, kind: input, shape index: {}]
  %s4 = inlined_call_operand.vmem [shape: f32[64,32], index: 4, kind: input, shape index: {}]
  %s5 = inlined_call_operand.vmem [shape: f32[1,32], index: 5, kind: input, shape index: {}]
  %s6 = inlined_call_operand.hbm [shape: f32[2,8,32], index: 6, kind: output, shape index: {}]
  %s7 = sld [smem:[#allocation0]]
  $region57: #{tpu_custom_call.1} parent=0
    _
  %s9 = ssub.s32 1, %s7
  %s10 = scalar_select 0, %s9, %s7
  $region1: #{tpu_custom_call.1} parent=0
    #allocation2 [shape = 'u8[8192]{0}', space=vmem, size = 0x2000, scoped, tag = 'output window, operand 0']
    #allocation3 [shape = 's32[2]{0}', space=sflag, size = 0x8, scoped, tag = 'scoped memory for tpu_custom_call.1']
    %11 = vsyncpa [#allocation3], 0
    %s12 = scalar_lea.sflag [#allocation3], 1
    %13 = vsyncpa %s12, 0
    loop: start=0, step=1, limit=4
    $region2: #{tpu_custom_call.1} parent=1 // loop_pre_header
      _
    $region3: #{tpu_custom_call.1} parent=1 // loop_header
      %s15 = sphi 0, %s19
      %p16 = scmp.ge.s32.totalorder %s15, 4
      %s25 = sphi 0, %s27
      %s28 = sphi 0, %s25
      %s29 = sphi 0, %s28
      %s45 = sphi 0, %s29
      %s49 = sphi 0, %s49
      %s51 = sphi 0, %s49
      %s52 = sphi 0, %s51
      %s66 = sphi 0, %s52
      %s70 = sphi 0, %s70
      %s72 = sphi 0, %s70
      %s73 = sphi 0, %s72
      %s87 = sphi 0, %s73
      %s91 = sphi 0, %s91
      %s93 = sphi 0, %s91
      %s94 = sphi 0, %s93
      %s108 = sphi 0, %s94
      %s112 = sphi 0, %s112
      %s114 = sphi 0, %s112
      %s115 = sphi 0, %s114
      %s129 = sphi 0, %s115
      %s133 = sphi 0, %s133
      %s135 = sphi 0, %s133
      %s136 = sphi 0, %s135
      %s150 = sphi 0, %s136
      %s156 = sphi 0, %s158
      %s159 = sphi 0, %s156
      %s160 = sphi 0, %s159
      %s176 = sphi 0, %s160
    $region4: #{tpu_custom_call.1} parent=1 // loop_header_branch
      %18 = sbr.rel (%p16) target = $region8
    $region5: #{tpu_custom_call.1} parent=1 // loop_body
      %s20 = ssub.s32 %s15, 1
      %s21 = ssub.s32 %s15, 2
      %s22 = sadd.s32 %s15, 1
      %s23 = ssub.s32 %s15, %s22
      %p24 = scmp.eq.s32.totalorder %s23, 0
      %s26 = sadd.s32 %s25, 1
      %s27 = scalar_select %p24, %s25, %s26
      %p30 = pneg %p24
      %p31 = scmp.eq.s32.totalorder %s15, 1
      %p32 = por %p30, %p31
      %p33 = scmp.ne.s32.totalorder %s25, %s28
      %p34 = scmp.eq.s32.totalorder %s15, 0
      %p35 = por %p33, %p34
      %p36 = scmp.ne.s32.totalorder %s25, %s28
      %p37 = scmp.eq.s32.totalorder %s20, 1
      %p38 = por %p36, %p37
      %p39 = scmp.ne.s32.totalorder %s28, %s29
      %p40 = scmp.eq.s32.totalorder %s20, 0
      %p41 = por %p39, %p40
      %p42 = scmp.ne.s32.totalorder %s28, %s29
      %p43 = scmp.eq.s32.totalorder %s21, 1
      %p44 = por %p42, %p43
      %p46 = scmp.ne.s32.totalorder %s29, %s45
      %p47 = scmp.eq.s32.totalorder %s21, 0
      %p48 = por %p46, %p47
      %s50 = sadd.s32 %s49, 1
      %p53 = scmp.eq.s32.totalorder %s15, 1
      %p54 = scmp.ne.s32.totalorder %s49, %s51
      %p55 = scmp.eq.s32.totalorder %s15, 0
      %p56 = por %p54, %p55
      %p57 = scmp.ne.s32.totalorder %s49, %s51
      %p58 = scmp.eq.s32.totalorder %s20, 1
      %p59 = por %p57, %p58
      %p60 = scmp.ne.s32.totalorder %s51, %s52
      %p61 = scmp.eq.s32.totalorder %s20, 0
      %p62 = por %p60, %p61
      %p63 = scmp.ne.s32.totalorder %s51, %s52
      %p64 = scmp.eq.s32.totalorder %s21, 1
      %p65 = por %p63, %p64
      %p67 = scmp.ne.s32.totalorder %s52, %s66
      %p68 = scmp.eq.s32.totalorder %s21, 0
      %p69 = por %p67, %p68
      %s71 = sadd.s32 %s70, 1
      %p74 = scmp.eq.s32.totalorder %s15, 1
      %p75 = scmp.ne.s32.totalorder %s70, %s72
      %p76 = scmp.eq.s32.totalorder %s15, 0
      %p77 = por %p75, %p76
      %p78 = scmp.ne.s32.totalorder %s70, %s72
      %p79 = scmp.eq.s32.totalorder %s20, 1
      %p80 = por %p78, %p79
      %p81 = scmp.ne.s32.totalorder %s72, %s73
      %p82 = scmp.eq.s32.totalorder %s20, 0
      %p83 = por %p81, %p82
      %p84 = scmp.ne.s32.totalorder %s72, %s73
      %p85 = scmp.eq.s32.totalorder %s21, 1
      %p86 = por %p84, %p85
      %p88 = scmp.ne.s32.totalorder %s73, %s87
      %p89 = scmp.eq.s32.totalorder %s21, 0
      %p90 = por %p88, %p89
      %s92 = sadd.s32 %s91, 1
      %p95 = scmp.eq.s32.totalorder %s15, 1
      %p96 = scmp.ne.s32.totalorder %s91, %s93
      %p97 = scmp.eq.s32.totalorder %s15, 0
      %p98 = por %p96, %p97
      %p99 = scmp.ne.s32.totalorder %s91, %s93
      %p100 = scmp.eq.s32.totalorder %s20, 1
      %p101 = por %p99, %p100
      %p102 = scmp.ne.s32.totalorder %s93, %s94
      %p103 = scmp.eq.s32.totalorder %s20, 0
      %p104 = por %p102, %p103
      %p105 = scmp.ne.s32.totalorder %s93, %s94
      %p106 = scmp.eq.s32.totalorder %s21, 1
      %p107 = por %p105, %p106
      %p109 = scmp.ne.s32.totalorder %s94, %s108
      %p110 = scmp.eq.s32.totalorder %s21, 0
      %p111 = por %p109, %p110
      %s113 = sadd.s32 %s112, 1
      %p116 = scmp.eq.s32.totalorder %s15, 1
      %p117 = scmp.ne.s32.totalorder %s112, %s114
      %p118 = scmp.eq.s32.totalorder %s15, 0
      %p119 = por %p117, %p118
      %p120 = scmp.ne.s32.totalorder %s112, %s114
      %p121 = scmp.eq.s32.totalorder %s20, 1
      %p122 = por %p120, %p121
      %p123 = scmp.ne.s32.totalorder %s114, %s115
      %p124 = scmp.eq.s32.totalorder %s20, 0
      %p125 = por %p123, %p124
      %p126 = scmp.ne.s32.totalorder %s114, %s115
      %p127 = scmp.eq.s32.totalorder %s21, 1
      %p128 = por %p126, %p127
      %p130 = scmp.ne.s32.totalorder %s115, %s129
      %p131 = scmp.eq.s32.totalorder %s21, 0
      %p132 = por %p130, %p131
      %s134 = sadd.s32 %s133, 1
      %p137 = scmp.eq.s32.totalorder %s15, 1
      %p138 = scmp.ne.s32.totalorder %s133, %s135
      %p139 = scmp.eq.s32.totalorder %s15, 0
      %p140 = por %p138, %p139
      %p141 = scmp.ne.s32.totalorder %s133, %s135
      %p142 = scmp.eq.s32.totalorder %s20, 1
      %p143 = por %p141, %p142
      %p144 = scmp.ne.s32.totalorder %s135, %s136
      %p145 = scmp.eq.s32.totalorder %s20, 0
      %p146 = por %p144, %p145
      %p147 = scmp.ne.s32.totalorder %s135, %s136
      %p148 = scmp.eq.s32.totalorder %s21, 1
      %p149 = por %p147, %p148
      %p151 = scmp.ne.s32.totalorder %s136, %s150
      %p152 = scmp.eq.s32.totalorder %s21, 0
      %p153 = por %p151, %p152
      %s154 = ssub.s32 %s15, %s22
      %p155 = scmp.eq.s32.totalorder %s154, 0
      %s157 = sadd.s32 %s156, 1
      %s158 = scalar_select %p155, %s156, %s157
      %p161 = pneg %p155
      %p162 = scmp.eq.s32.totalorder %s15, 1
      %p163 = por %p161, %p162
      %p164 = scmp.ne.s32.totalorder %s156, %s159
      %p165 = scmp.eq.s32.totalorder %s15, 0
      %p166 = por %p164, %p165
      %p167 = scmp.ne.s32.totalorder %s156, %s159
      %p168 = scmp.eq.s32.totalorder %s20, 1
      %p169 = por %p167, %p168
      %p170 = scmp.ne.s32.totalorder %s159, %s160
      %p171 = scmp.eq.s32.totalorder %s20, 0
      %p172 = por %p170, %p171
      %p173 = scmp.ne.s32.totalorder %s159, %s160
      %p174 = scmp.eq.s32.totalorder %s21, 1
      %p175 = por %p173, %p174
      %p177 = scmp.ne.s32.totalorder %s160, %s176
      %p178 = scmp.eq.s32.totalorder %s21, 0
      %p179 = por %p177, %p178
      %p180 = scmp.le.s32.totalorder 1, %s15
      %p181 = scmp.lt.s32.totalorder %s15, 3
      %p182 = pnand %p180, %p181
      %p183 = pneg %p182
      // Predicated region
      $region9: #{tpu_custom_call.1} parent=5 // pred_check
        _
      $region10: #{tpu_custom_call.1} parent=5 // pred_check_branch
        %185 = sbr.rel (%p182) target = $region12
      $region11: #{tpu_custom_call.1} parent=5 // pred_region
        %s186 = ssub.s32 %s15, 1
        // Predicated region
        $region13: #{tpu_custom_call.1} parent=11 // pred_check
          %p187 = pneg %p62
        $region14: #{tpu_custom_call.1} parent=11 // pred_check_branch
          %189 = sbr.rel (%p187) target = $region16
        $region15: #{tpu_custom_call.1} parent=11 // pred_region
          _
        $region16: #{tpu_custom_call.1} parent=11 // pred_fallthru
          _
        // Predicated region
        $region17: #{tpu_custom_call.1} parent=11 // pred_check
          %p190 = pneg %p83
        $region18: #{tpu_custom_call.1} parent=11 // pred_check_branch
          %192 = sbr.rel (%p190) target = $region20
        $region19: #{tpu_custom_call.1} parent=11 // pred_region
          _
        $region20: #{tpu_custom_call.1} parent=11 // pred_fallthru
          _
        // Predicated region
        $region21: #{tpu_custom_call.1} parent=11 // pred_check
          %p193 = pneg %p104
        $region22: #{tpu_custom_call.1} parent=11 // pred_check_branch
          %195 = sbr.rel (%p193) target = $region24
        $region23: #{tpu_custom_call.1} parent=11 // pred_region
          _
        $region24: #{tpu_custom_call.1} parent=11 // pred_fallthru
          _
        // Predicated region
        $region25: #{tpu_custom_call.1} parent=11 // pred_check
          %p196 = pneg %p125
        $region26: #{tpu_custom_call.1} parent=11 // pred_check_branch
          %198 = sbr.rel (%p196) target = $region28
        $region27: #{tpu_custom_call.1} parent=11 // pred_region
          _
        $region28: #{tpu_custom_call.1} parent=11 // pred_fallthru
          _
        // Predicated region
        $region29: #{tpu_custom_call.1} parent=11 // pred_check
          %p199 = pneg %p146
        $region30: #{tpu_custom_call.1} parent=11 // pred_check_branch
          %201 = sbr.rel (%p199) target = $region32
        $region31: #{tpu_custom_call.1} parent=11 // pred_region
          _
        $region32: #{tpu_custom_call.1} parent=11 // pred_fallthru
          _
      $region12: #{tpu_custom_call.1} parent=5 // pred_fallthru
        _
      %p202 = scmp.lt.s32.totalorder %s15, 2
      // Predicated region
      $region33: #{tpu_custom_call.1} parent=5 // pred_check
        %p203 = pneg %p202
      $region34: #{tpu_custom_call.1} parent=5 // pred_check_branch
        %205 = sbr.rel (%p203) target = $region36
      $region35: #{tpu_custom_call.1} parent=5 // pred_region
        // Predicated region
        $region37: #{tpu_custom_call.1} parent=35 // pred_check
          %p206 = pneg %p35
        $region38: #{tpu_custom_call.1} parent=35 // pred_check_branch
          %208 = sbr.rel (%p206) target = $region40
        $region39: #{tpu_custom_call.1} parent=35 // pred_region
          %p209 = scmp.lt.s32.totalorder %s15, 1
          %s210 = scalar_select %p209, %s15, 1
          %s211 = smul.addr %s210, 8
          %s212 = scalar_lea.vmem %s0, %s211
        $region40: #{tpu_custom_call.1} parent=35 // pred_fallthru
          _
      $region36: #{tpu_custom_call.1} parent=5 // pred_fallthru
        _
      %p213 = scmp.le.s32.totalorder 1, %s15
      %p214 = scmp.lt.s32.totalorder %s15, 3
      %p215 = pnand %p213, %p214
      %p216 = pneg %p215
      // Predicated region
      $region41: #{tpu_custom_call.1} parent=5 // pred_check
        _
      $region42: #{tpu_custom_call.1} parent=5 // pred_check_branch
        %218 = sbr.rel (%p215) target = $region44
      $region43: #{tpu_custom_call.1} parent=5 // pred_region
        %s219 = ssub.s32 %s15, 1
        %p220 = scmp.lt.s32.totalorder %s20, 1
        %s221 = scalar_select %p220, %s20, 1
        %s222 = smul.addr %s221, 8
        %s223 = scalar_lea.vmem %s0, %s222
        %p224 = pneg %p41
        %p225 = pneg %p38
        %p226 = pneg %p62
        %p227 = pneg %p59
        %p228 = pneg %p83
        %p229 = pneg %p80
        %p230 = pneg %p104
        %p231 = pneg %p101
        %p232 = pneg %p125
        %p233 = pneg %p122
        %p234 = pneg %p146
        %p235 = pneg %p143
        %p236 = pneg %p172
        %p237 = pneg %p169
        %s238 = sand.u32 %s159, 1
        %s239 = scalar_lea.sflag [#allocation3], %s238
        %s240 = sand.u32 %s159, 1
        %s241 = smul.addr %s240, 8
        %s242 = scalar_lea.vmem [#allocation2], %s241
        %p243 = scmp.lt.s32.totalorder %s20, 1
        %s244 = scalar_select %p243, %s20, 1
        %s245 = smul.addr %s244, 8
        %s246 = scalar_lea.vmem %s0, %s245
        %v247 = vld [vmem:[%s246] sm:$0xff]
        %vm248 = vcmask 261120
        %v249 = vsel %vm248, %v247, 0.0
        %250 = vadd.xlane.f32.xlu0 %v249
        %v251 = vpop.xlane.xlu0 %250
        %v252 = vrcp.pop 32.0
        %v253 = vmul.f32 %v251, %v252
        %v254 = vsub.f32 %v247, %v253
        %v255 = vmul.f32 %v254, %v254
        %v256 = vsel %vm248, %v255, 0.0
        %257 = vadd.xlane.f32.xlu0 %v256
        %v258 = vpop.xlane.xlu0 %257
        %v259 = vmul.f32 %v258, %v252
        %v260 = vadd.f32 %v259, 1e-05
        %v261 = vrsqrt.pop %v260
        %v262 = vmul.f32 %v254, %v261
        %v263 = vld [vmem:[%s1] sm:$0x1]
        %v265 = vlaneseq
        %v266 = vshrl.u32 %v265, 7
        %v267 = vsub.s32 0, %v266
        %v268 = vrot.slane %v263, %v267
        %v270 = vmul.f32 %v262, %v268
        %v271 = vld [vmem:[%s2] sm:$0x1]
        %v273 = vlaneseq
        %v274 = vshrl.u32 %v273, 7
        %v275 = vsub.s32 0, %v274
        %v276 = vrot.slane %v271, %v275
        %v278 = vadd.f32 %v270, %v276
        %v279 = vld [vmem:[%s3] sm:$0xff]
        %v280 = vld [vmem:[%s3 + $0x8] sm:$0xff]
        %v281 = vld [vmem:[%s3 + $0x10] sm:$0xff]
        %v282 = vld [vmem:[%s3 + $0x18] sm:$0xff]
        %v283 = vld [vmem:[%s3 + $0x20] sm:$0xff]
        %v284 = vld [vmem:[%s3 + $0x28] sm:$0xff]
        %v285 = vld [vmem:[%s3 + $0x30] sm:$0xff]
        %v286 = vld [vmem:[%s3 + $0x38] sm:$0xff]
        %v288 = vsel %vm248, %v278, 0
        %290 = vmatprep.subr.mxu0 0.0
        %291 = vmatpush1.msra.mxu0 0.0
        %292 = vmatprep.subr.mxu0 0.0
        %293 = vmatpush1.msra.mxu0 0.0
        %294 = vmatprep.subr.mxu0 0.0
        %295 = vmatpush1.msra.mxu0 0.0
        %296 = vmatprep.subr.mxu0 0.0
        %297 = vmatpush1.msra.mxu0 0.0
        %298 = vmatprep.subr.mxu0 0.0
        %299 = vmatpush1.msra.mxu0 0.0
        %300 = vmatprep.subr.mxu0 0.0
        %301 = vmatpush1.msra.mxu0 0.0
        %302 = vmatprep.subr.mxu0 0.0
        %303 = vmatpush1.msra.mxu0 0.0
        %304 = vmatprep.subr.mxu0 0.0
        %305 = vmatpush1.msra.mxu0 0.0
        %306 = vmatprep.subr.mxu0 0.0
        %307 = vmatpush1.msra.mxu0 0.0
        %308 = vmatprep.subr.mxu0 0.0
        %309 = vmatpush1.msra.mxu0 0.0
        %310 = vmatprep.subr.mxu0 0.0
        %311 = vmatpush1.msra.mxu0 0.0
        %312 = vmatprep.subr.mxu0 0.0
        %313 = vmatpush1.msra.mxu0 0.0
        %314 = vmatprep.subr.mxu0 %v286
        %315 = vmatpush1.msra.mxu0 %v285
        %316 = vmatprep.subr.mxu0 %v284
        %317 = vmatpush1.msra.mxu0 %v283
        %318 = vmatprep.subr.mxu0 %v282
        %319 = vmatpush1.msra.mxu0 %v281
        %320 = vmatprep.subr.mxu0 %v280
        %321 = vmatpush1.msra.mxu0 %v279
        %322 = vmatprep.subr.mxu0 0.0
        %323 = vmatpush2.msra.mxu0 0.0
        %324 = vmatprep.subr.mxu0 0.0
        %325 = vmatpush2.msra.mxu0 0.0
        %326 = vmatprep.subr.mxu0 0.0
        %327 = vmatpush2.msra.mxu0 0.0
        %328 = vmatprep.subr.mxu0 0.0
        %329 = vmatpush2.msra.mxu0 0.0
        %330 = vmatprep.subr.mxu0 0.0
        %331 = vmatpush2.msra.mxu0 0.0
        %332 = vmatprep.subr.mxu0 0.0
        %333 = vmatpush2.msra.mxu0 0.0
        %334 = vmatprep.subr.mxu0 0.0
        %335 = vmatpush2.msra.mxu0 0.0
        %336 = vmatprep.subr.mxu0 0.0
        %337 = vmatpush2.msra.mxu0 0.0
        %338 = vmatprep.subr.mxu0 0.0
        %339 = vmatpush2.msra.mxu0 0.0
        %340 = vmatprep.subr.mxu0 0.0
        %341 = vmatpush2.msra.mxu0 0.0
        %342 = vmatprep.subr.mxu0 0.0
        %343 = vmatpush2.msra.mxu0 0.0
        %344 = vmatprep.subr.mxu0 0.0
        %345 = vmatpush2.msra.mxu0 0.0
        %346 = vmatprep.subr.mxu0 0.0
        %347 = vmatpush2.msra.mxu0 0.0
        %348 = vmatprep.subr.mxu0 0.0
        %349 = vmatpush2.msra.mxu0 0.0
        %350 = vmatprep.subr.mxu0 0.0
        %351 = vmatpush2.msra.mxu0 0.0
        %352 = vmatprep.subr.mxu0 0.0
        %353 = vmatpush2.msra.mxu0 0.0
        %354 = vmatprep.mubr.f32.mxu0 0.0
        %355 = vmatmul.mubr.f32.gmra.mxu0 %v288
        %v356 = vpop.f32.mrf.mxu0
        %v357 = vadd.f32 0.0, %v356
        %v358 = vpop.f32.mrf.mxu0
        %v359 = vadd.f32 0.0, %v358
        %360 = vdwg.mxu0
        %362 = vrot.lane.b32.xlu0 %v357, 64
        %v363 = vpop.permute.xlu0 %362
        %vm364 = vcmask 130048
        %v365 = vsel %vm364, %v357, 0
        %v367 = vsel %vm364, %v363, 0
        %369 = vmatprep.subr.mxu0 0.0
        %370 = vmatpush1.xpose.msra.mxu0 0.0
        %371 = vmatprep.subr.mxu0 0.0
        %372 = vmatpush1.xpose.msra.mxu0 0.0
        %373 = vmatprep.subr.mxu0 0.0
        %374 = vmatpush1.xpose.msra.mxu0 0.0
        %375 = vmatprep.subr.mxu0 0.0
        %376 = vmatpush1.xpose.msra.mxu0 0.0
        %377 = vmatprep.subr.mxu0 0.0
        %378 = vmatpush1.xpose.msra.mxu0 0.0
        %379 = vmatprep.subr.mxu0 0.0
        %380 = vmatpush1.xpose.msra.mxu0 0.0
        %381 = vmatprep.subr.mxu0 0.0
        %382 = vmatpush1.xpose.msra.mxu0 0.0
        %383 = vmatprep.subr.mxu0 0.0
        %384 = vmatpush1.xpose.msra.mxu0 0.0
        %385 = vmatprep.subr.mxu0 0.0
        %386 = vmatpush1.xpose.msra.mxu0 0.0
        %387 = vmatprep.subr.mxu0 0.0
        %388 = vmatpush1.xpose.msra.mxu0 0.0
        %389 = vmatprep.subr.mxu0 0.0
        %390 = vmatpush1.xpose.msra.mxu0 0.0
        %391 = vmatprep.subr.mxu0 0.0
        %392 = vmatpush1.xpose.msra.mxu0 0.0
        %393 = vmatprep.subr.mxu0 0.0
        %394 = vmatpush1.xpose.msra.mxu0 0.0
        %395 = vmatprep.subr.mxu0 0.0
        %396 = vmatpush1.xpose.msra.mxu0 0.0
        %397 = vmatprep.subr.mxu0 0.0
        %398 = vmatpush1.xpose.msra.mxu0 0.0
        %399 = vmatprep.subr.mxu0 0.0
        %400 = vmatpush1.xpose.msra.mxu0 %v367
        %401 = vmatprep.subr.mxu0 0.0
        %402 = vmatpush2.xpose.msra.mxu0 0.0
        %403 = vmatprep.subr.mxu0 0.0
        %404 = vmatpush2.xpose.msra.mxu0 0.0
        %405 = vmatprep.subr.mxu0 0.0
        %406 = vmatpush2.xpose.msra.mxu0 0.0
        %407 = vmatprep.subr.mxu0 0.0
        %408 = vmatpush2.xpose.msra.mxu0 0.0
        %409 = vmatprep.subr.mxu0 0.0
        %410 = vmatpush2.xpose.msra.mxu0 0.0
        %411 = vmatprep.subr.mxu0 0.0
        %412 = vmatpush2.xpose.msra.mxu0 0.0
        %413 = vmatprep.subr.mxu0 0.0
        %414 = vmatpush2.xpose.msra.mxu0 0.0
        %415 = vmatprep.subr.mxu0 0.0
        %416 = vmatpush2.xpose.msra.mxu0 0.0
        %417 = vmatprep.subr.mxu0 0.0
        %418 = vmatpush2.xpose.msra.mxu0 0.0
        %419 = vmatprep.subr.mxu0 0.0
        %420 = vmatpush2.xpose.msra.mxu0 0.0
        %421 = vmatprep.subr.mxu0 0.0
        %422 = vmatpush2.xpose.msra.mxu0 0.0
        %423 = vmatprep.subr.mxu0 0.0
        %424 = vmatpush2.xpose.msra.mxu0 0.0
        %425 = vmatprep.subr.mxu0 0.0
        %426 = vmatpush2.xpose.msra.mxu0 0.0
        %427 = vmatprep.subr.mxu0 0.0
        %428 = vmatpush2.xpose.msra.mxu0 0.0
        %429 = vmatprep.subr.mxu0 0.0
        %430 = vmatpush2.xpose.msra.mxu0 0.0
        %431 = vmatprep.subr.mxu0 0.0
        %432 = vmatpush2.xpose.msra.mxu0 0.0
        %433 = vmatprep.mubr.f32.mxu0 0.0
        %434 = vmatmul.mubr.f32.gmra.mxu0 %v365
        %v435 = vpop.f32.mrf.mxu0
        %v436 = vadd.f32 0.0, %v435
        %v437 = vpop.f32.mrf.mxu0
        %438 = vdwg.mxu0
        %vm439 = vcmask 64512
        %v440 = vsel %vm439, %v436, -inf
        %441 = vmax.xlane.f32.xlu0 %v440
        %v442 = vpop.xlane.xlu0 %441
        %v443 = vsub.f32 %v436, %v442
        %v444 = vmul.f32 %v443, 1.442695
        %v445 = vpow.pop %v444
        %v446 = vsel %vm439, %v445, 0.0
        %447 = vadd.xlane.f32.xlu0 %v446
        %v448 = vpop.xlane.xlu0 %447
        %v449 = vrcp.pop %v448
        %v450 = vmul.f32 %v445, %v449
        %v452 = vsel %vm439, %v450, 0
        %454 = vmatprep.subr.mxu0 0.0
        %455 = vmatpush1.msra.mxu0 0.0
        %456 = vmatprep.subr.mxu0 0.0
        %457 = vmatpush1.msra.mxu0 0.0
        %458 = vmatprep.subr.mxu0 0.0
        %459 = vmatpush1.msra.mxu0 0.0
        %460 = vmatprep.subr.mxu0 0.0
        %461 = vmatpush1.msra.mxu0 0.0
        %462 = vmatprep.subr.mxu0 0.0
        %463 = vmatpush1.msra.mxu0 0.0
        %464 = vmatprep.subr.mxu0 0.0
        %465 = vmatpush1.msra.mxu0 0.0
        %466 = vmatprep.subr.mxu0 0.0
        %467 = vmatpush1.msra.mxu0 0.0
        %468 = vmatprep.subr.mxu0 0.0
        %469 = vmatpush1.msra.mxu0 0.0
        %470 = vmatprep.subr.mxu0 0.0
        %471 = vmatpush1.msra.mxu0 0.0
        %472 = vmatprep.subr.mxu0 0.0
        %473 = vmatpush1.msra.mxu0 0.0
        %474 = vmatprep.subr.mxu0 0.0
        %475 = vmatpush1.msra.mxu0 0.0
        %476 = vmatprep.subr.mxu0 0.0
        %477 = vmatpush1.msra.mxu0 0.0
        %478 = vmatprep.subr.mxu0 0.0
        %479 = vmatpush1.msra.mxu0 0.0
        %480 = vmatprep.subr.mxu0 0.0
        %481 = vmatpush1.msra.mxu0 0.0
        %482 = vmatprep.subr.mxu0 0.0
        %483 = vmatpush1.msra.mxu0 0.0
        %484 = vmatprep.subr.mxu0 0.0
        %485 = vmatpush1.msra.mxu0 %v359
        %486 = vmatprep.subr.mxu0 0.0
        %487 = vmatpush2.msra.mxu0 0.0
        %488 = vmatprep.subr.mxu0 0.0
        %489 = vmatpush2.msra.mxu0 0.0
        %490 = vmatprep.subr.mxu0 0.0
        %491 = vmatpush2.msra.mxu0 0.0
        %492 = vmatprep.subr.mxu0 0.0
        %493 = vmatpush2.msra.mxu0 0.0
        %494 = vmatprep.subr.mxu0 0.0
        %495 = vmatpush2.msra.mxu0 0.0
        %496 = vmatprep.subr.mxu0 0.0
        %497 = vmatpush2.msra.mxu0 0.0
        %498 = vmatprep.subr.mxu0 0.0
        %499 = vmatpush2.msra.mxu0 0.0
        %500 = vmatprep.subr.mxu0 0.0
        %501 = vmatpush2.msra.mxu0 0.0
        %502 = vmatprep.subr.mxu0 0.0
        %503 = vmatpush2.msra.mxu0 0.0
        %504 = vmatprep.subr.mxu0 0.0
        %505 = vmatpush2.msra.mxu0 0.0
        %506 = vmatprep.subr.mxu0 0.0
        %507 = vmatpush2.msra.mxu0 0.0
        %508 = vmatprep.subr.mxu0 0.0
        %509 = vmatpush2.msra.mxu0 0.0
        %510 = vmatprep.subr.mxu0 0.0
        %511 = vmatpush2.msra.mxu0 0.0
        %512 = vmatprep.subr.mxu0 0.0
        %513 = vmatpush2.msra.mxu0 0.0
        %514 = vmatprep.subr.mxu0 0.0
        %515 = vmatpush2.msra.mxu0 0.0
        %516 = vmatprep.subr.mxu0 0.0
        %517 = vmatpush2.msra.mxu0 0.0
        %518 = vmatprep.mubr.f32.mxu0 0.0
        %519 = vmatmul.mubr.f32.gmra.mxu0 %v452
        %v520 = vpop.f32.mrf.mxu0
        %v521 = vadd.f32 0.0, %v520
        %v522 = vpop.f32.mrf.mxu0
        %523 = vdwg.mxu0
        %524 = vrot.lane.b32.xlu0 %v357, 112
        %v525 = vpop.permute.xlu0 %524
        %526 = vrot.lane.b32.xlu0 %v357, 48
        %v527 = vpop.permute.xlu0 %526
        %v528 = vsel %vm364, %v525, 0
        %v530 = vsel %vm364, %v527, 0
        %532 = vmatprep.subr.mxu0 0.0
        %533 = vmatpush1.xpose.msra.mxu0 0.0
        %534 = vmatprep.subr.mxu0 0.0
        %535 = vmatpush1.xpose.msra.mxu0 0.0
        %536 = vmatprep.subr.mxu0 0.0
        %537 = vmatpush1.xpose.msra.mxu0 0.0
        %538 = vmatprep.subr.mxu0 0.0
        %539 = vmatpush1.xpose.msra.mxu0 0.0
        %540 = vmatprep.subr.mxu0 0.0
        %541 = vmatpush1.xpose.msra.mxu0 0.0
        %542 = vmatprep.subr.mxu0 0.0
        %543 = vmatpush1.xpose.msra.mxu0 0.0
        %544 = vmatprep.subr.mxu0 0.0
        %545 = vmatpush1.xpose.msra.mxu0 0.0
        %546 = vmatprep.subr.mxu0 0.0
        %547 = vmatpush1.xpose.msra.mxu0 0.0
        %548 = vmatprep.subr.mxu0 0.0
        %549 = vmatpush1.xpose.msra.mxu0 0.0
        %550 = vmatprep.subr.mxu0 0.0
        %551 = vmatpush1.xpose.msra.mxu0 0.0
        %552 = vmatprep.subr.mxu0 0.0
        %553 = vmatpush1.xpose.msra.mxu0 0.0
        %554 = vmatprep.subr.mxu0 0.0
        %555 = vmatpush1.xpose.msra.mxu0 0.0
        %556 = vmatprep.subr.mxu0 0.0
        %557 = vmatpush1.xpose.msra.mxu0 0.0
        %558 = vmatprep.subr.mxu0 0.0
        %559 = vmatpush1.xpose.msra.mxu0 0.0
        %560 = vmatprep.subr.mxu0 0.0
        %561 = vmatpush1.xpose.msra.mxu0 0.0
        %562 = vmatprep.subr.mxu0 0.0
        %563 = vmatpush1.xpose.msra.mxu0 %v530
        %564 = vmatprep.subr.mxu0 0.0
        %565 = vmatpush2.xpose.msra.mxu0 0.0
        %566 = vmatprep.subr.mxu0 0.0
        %567 = vmatpush2.xpose.msra.mxu0 0.0
        %568 = vmatprep.subr.mxu0 0.0
        %569 = vmatpush2.xpose.msra.mxu0 0.0
        %570 = vmatprep.subr.mxu0 0.0
        %571 = vmatpush2.xpose.msra.mxu0 0.0
        %572 = vmatprep.subr.mxu0 0.0
        %573 = vmatpush2.xpose.msra.mxu0 0.0
        %574 = vmatprep.subr.mxu0 0.0
        %575 = vmatpush2.xpose.msra.mxu0 0.0
        %576 = vmatprep.subr.mxu0 0.0
        %577 = vmatpush2.xpose.msra.mxu0 0.0
        %578 = vmatprep.subr.mxu0 0.0
        %579 = vmatpush2.xpose.msra.mxu0 0.0
        %580 = vmatprep.subr.mxu0 0.0
        %581 = vmatpush2.xpose.msra.mxu0 0.0
        %582 = vmatprep.subr.mxu0 0.0
        %583 = vmatpush2.xpose.msra.mxu0 0.0
        %584 = vmatprep.subr.mxu0 0.0
        %585 = vmatpush2.xpose.msra.mxu0 0.0
        %586 = vmatprep.subr.mxu0 0.0
        %587 = vmatpush2.xpose.msra.mxu0 0.0
        %588 = vmatprep.subr.mxu0 0.0
        %589 = vmatpush2.xpose.msra.mxu0 0.0
        %590 = vmatprep.subr.mxu0 0.0
        %591 = vmatpush2.xpose.msra.mxu0 0.0
        %592 = vmatprep.subr.mxu0 0.0
        %593 = vmatpush2.xpose.msra.mxu0 0.0
        %594 = vmatprep.subr.mxu0 0.0
        %595 = vmatpush2.xpose.msra.mxu0 0.0
        %596 = vmatprep.mubr.f32.mxu0 0.0
        %597 = vmatmul.mubr.f32.gmra.mxu0 %v528
        %v598 = vpop.f32.mrf.mxu0
        %v599 = vadd.f32 0.0, %v598
        %v600 = vpop.f32.mrf.mxu0
        %601 = vdwg.mxu0
        %v602 = vsel %vm439, %v599, -inf
        %603 = vmax.xlane.f32.xlu0 %v602
        %v604 = vpop.xlane.xlu0 %603
        %v605 = vsub.f32 %v599, %v604
        %v606 = vmul.f32 %v605, 1.442695
        %v607 = vpow.pop %v606
        %v608 = vsel %vm439, %v607, 0.0
        %609 = vadd.xlane.f32.xlu0 %v608
        %v610 = vpop.xlane.xlu0 %609
        %v611 = vrcp.pop %v610
        %v612 = vmul.f32 %v607, %v611
        %614 = vrot.lane.b32.xlu0 %v359, 112
        %v615 = vpop.permute.xlu0 %614
        %v618 = vsel %vm439, %v612, 0
        %620 = vmatprep.subr.mxu0 0.0
        %621 = vmatpush1.msra.mxu0 0.0
        %622 = vmatprep.subr.mxu0 0.0
        %623 = vmatpush1.msra.mxu0 0.0
        %624 = vmatprep.subr.mxu0 0.0
        %625 = vmatpush1.msra.mxu0 0.0
        %626 = vmatprep.subr.mxu0 0.0
        %627 = vmatpush1.msra.mxu0 0.0
        %628 = vmatprep.subr.mxu0 0.0
        %629 = vmatpush1.msra.mxu0 0.0
        %630 = vmatprep.subr.mxu0 0.0
        %631 = vmatpush1.msra.mxu0 0.0
        %632 = vmatprep.subr.mxu0 0.0
        %633 = vmatpush1.msra.mxu0 0.0
        %634 = vmatprep.subr.mxu0 0.0
        %635 = vmatpush1.msra.mxu0 0.0
        %636 = vmatprep.subr.mxu0 0.0
        %637 = vmatpush1.msra.mxu0 0.0
        %638 = vmatprep.subr.mxu0 0.0
        %639 = vmatpush1.msra.mxu0 0.0
        %640 = vmatprep.subr.mxu0 0.0
        %641 = vmatpush1.msra.mxu0 0.0
        %642 = vmatprep.subr.mxu0 0.0
        %643 = vmatpush1.msra.mxu0 0.0
        %644 = vmatprep.subr.mxu0 0.0
        %645 = vmatpush1.msra.mxu0 0.0
        %646 = vmatprep.subr.mxu0 0.0
        %647 = vmatpush1.msra.mxu0 0.0
        %648 = vmatprep.subr.mxu0 0.0
        %649 = vmatpush1.msra.mxu0 0.0
        %650 = vmatprep.subr.mxu0 0.0
        %651 = vmatpush1.msra.mxu0 %v615
        %652 = vmatprep.subr.mxu0 0.0
        %653 = vmatpush2.msra.mxu0 0.0
        %654 = vmatprep.subr.mxu0 0.0
        %655 = vmatpush2.msra.mxu0 0.0
        %656 = vmatprep.subr.mxu0 0.0
        %657 = vmatpush2.msra.mxu0 0.0
        %658 = vmatprep.subr.mxu0 0.0
        %659 = vmatpush2.msra.mxu0 0.0
        %660 = vmatprep.subr.mxu0 0.0
        %661 = vmatpush2.msra.mxu0 0.0
        %662 = vmatprep.subr.mxu0 0.0
        %663 = vmatpush2.msra.mxu0 0.0
        %664 = vmatprep.subr.mxu0 0.0
        %665 = vmatpush2.msra.mxu0 0.0
        %666 = vmatprep.subr.mxu0 0.0
        %667 = vmatpush2.msra.mxu0 0.0
        %668 = vmatprep.subr.mxu0 0.0
        %669 = vmatpush2.msra.mxu0 0.0
        %670 = vmatprep.subr.mxu0 0.0
        %671 = vmatpush2.msra.mxu0 0.0
        %672 = vmatprep.subr.mxu0 0.0
        %673 = vmatpush2.msra.mxu0 0.0
        %674 = vmatprep.subr.mxu0 0.0
        %675 = vmatpush2.msra.mxu0 0.0
        %676 = vmatprep.subr.mxu0 0.0
        %677 = vmatpush2.msra.mxu0 0.0
        %678 = vmatprep.subr.mxu0 0.0
        %679 = vmatpush2.msra.mxu0 0.0
        %680 = vmatprep.subr.mxu0 0.0
        %681 = vmatpush2.msra.mxu0 0.0
        %682 = vmatprep.subr.mxu0 0.0
        %683 = vmatpush2.msra.mxu0 0.0
        %684 = vmatprep.mubr.f32.mxu0 0.0
        %685 = vmatmul.mubr.f32.gmra.mxu0 %v618
        %v686 = vpop.f32.mrf.mxu0
        %v687 = vadd.f32 0.0, %v686
        %v688 = vpop.f32.mrf.mxu0
        %689 = vdwg.mxu0
        %690 = vrot.lane.b32.xlu0 %v357, 96
        %v691 = vpop.permute.xlu0 %690
        %692 = vrot.lane.b32.xlu0 %v357, 32
        %v693 = vpop.permute.xlu0 %692
        %v694 = vsel %vm364, %v691, 0
        %v696 = vsel %vm364, %v693, 0
        %698 = vmatprep.subr.mxu0 0.0
        %699 = vmatpush1.xpose.msra.mxu0 0.0
        %700 = vmatprep.subr.mxu0 0.0
        %701 = vmatpush1.xpose.msra.mxu0 0.0
        %702 = vmatprep.subr.mxu0 0.0
        %703 = vmatpush1.xpose.msra.mxu0 0.0
        %704 = vmatprep.subr.mxu0 0.0
        %705 = vmatpush1.xpose.msra.mxu0 0.0
        %706 = vmatprep.subr.mxu0 0.0
        %707 = vmatpush1.xpose.msra.mxu0 0.0
        %708 = vmatprep.subr.mxu0 0.0
        %709 = vmatpush1.xpose.msra.mxu0 0.0
        %710 = vmatprep.subr.mxu0 0.0
        %711 = vmatpush1.xpose.msra.mxu0 0.0
        %712 = vmatprep.subr.mxu0 0.0
        %713 = vmatpush1.xpose.msra.mxu0 0.0
        %714 = vmatprep.subr.mxu0 0.0
        %715 = vmatpush1.xpose.msra.mxu0 0.0
        %716 = vmatprep.subr.mxu0 0.0
        %717 = vmatpush1.xpose.msra.mxu0 0.0
        %718 = vmatprep.subr.mxu0 0.0
        %719 = vmatpush1.xpose.msra.mxu0 0.0
        %720 = vmatprep.subr.mxu0 0.0
        %721 = vmatpush1.xpose.msra.mxu0 0.0
        %722 = vmatprep.subr.mxu0 0.0
        %723 = vmatpush1.xpose.msra.mxu0 0.0
        %724 = vmatprep.subr.mxu0 0.0
        %725 = vmatpush1.xpose.msra.mxu0 0.0
        %726 = vmatprep.subr.mxu0 0.0
        %727 = vmatpush1.xpose.msra.mxu0 0.0
        %728 = vmatprep.subr.mxu0 0.0
        %729 = vmatpush1.xpose.msra.mxu0 %v696
        %730 = vmatprep.subr.mxu0 0.0
        %731 = vmatpush2.xpose.msra.mxu0 0.0
        %732 = vmatprep.subr.mxu0 0.0
        %733 = vmatpush2.xpose.msra.mxu0 0.0
        %734 = vmatprep.subr.mxu0 0.0
        %735 = vmatpush2.xpose.msra.mxu0 0.0
        %736 = vmatprep.subr.mxu0 0.0
        %737 = vmatpush2.xpose.msra.mxu0 0.0
        %738 = vmatprep.subr.mxu0 0.0
        %739 = vmatpush2.xpose.msra.mxu0 0.0
        %740 = vmatprep.subr.mxu0 0.0
        %741 = vmatpush2.xpose.msra.mxu0 0.0
        %742 = vmatprep.subr.mxu0 0.0
        %743 = vmatpush2.xpose.msra.mxu0 0.0
        %744 = vmatprep.subr.mxu0 0.0
        %745 = vmatpush2.xpose.msra.mxu0 0.0
        %746 = vmatprep.subr.mxu0 0.0
        %747 = vmatpush2.xpose.msra.mxu0 0.0
        %748 = vmatprep.subr.mxu0 0.0
        %749 = vmatpush2.xpose.msra.mxu0 0.0
        %750 = vmatprep.subr.mxu0 0.0
        %751 = vmatpush2.xpose.msra.mxu0 0.0
        %752 = vmatprep.subr.mxu0 0.0
        %753 = vmatpush2.xpose.msra.mxu0 0.0
        %754 = vmatprep.subr.mxu0 0.0
        %755 = vmatpush2.xpose.msra.mxu0 0.0
        %756 = vmatprep.subr.mxu0 0.0
        %757 = vmatpush2.xpose.msra.mxu0 0.0
        %758 = vmatprep.subr.mxu0 0.0
        %759 = vmatpush2.xpose.msra.mxu0 0.0
        %760 = vmatprep.subr.mxu0 0.0
        %761 = vmatpush2.xpose.msra.mxu0 0.0
        %762 = vmatprep.mubr.f32.mxu0 0.0
        %763 = vmatmul.mubr.f32.gmra.mxu0 %v694
        %v764 = vpop.f32.mrf.mxu0
        %v765 = vadd.f32 0.0, %v764
        %v766 = vpop.f32.mrf.mxu0
        %767 = vdwg.mxu0
        %v768 = vsel %vm439, %v765, -inf
        %769 = vmax.xlane.f32.xlu0 %v768
        %v770 = vpop.xlane.xlu0 %769
        %v771 = vsub.f32 %v765, %v770
        %v772 = vmul.f32 %v771, 1.442695
        %v773 = vpow.pop %v772
        %v774 = vsel %vm439, %v773, 0.0
        %775 = vadd.xlane.f32.xlu0 %v774
        %v776 = vpop.xlane.xlu0 %775
        %v777 = vrcp.pop %v776
        %v778 = vmul.f32 %v773, %v777
        %779 = vrot.lane.b32.xlu0 %v359, 96
        %v780 = vpop.permute.xlu0 %779
        %v783 = vsel %vm439, %v778, 0
        %785 = vmatprep.subr.mxu0 0.0
        %786 = vmatpush1.msra.mxu0 0.0
        %787 = vmatprep.subr.mxu0 0.0
        %788 = vmatpush1.msra.mxu0 0.0
        %789 = vmatprep.subr.mxu0 0.0
        %790 = vmatpush1.msra.mxu0 0.0
        %791 = vmatprep.subr.mxu0 0.0
        %792 = vmatpush1.msra.mxu0 0.0
        %793 = vmatprep.subr.mxu0 0.0
        %794 = vmatpush1.msra.mxu0 0.0
        %795 = vmatprep.subr.mxu0 0.0
        %796 = vmatpush1.msra.mxu0 0.0
        %797 = vmatprep.subr.mxu0 0.0
        %798 = vmatpush1.msra.mxu0 0.0
        %799 = vmatprep.subr.mxu0 0.0
        %800 = vmatpush1.msra.mxu0 0.0
        %801 = vmatprep.subr.mxu0 0.0
        %802 = vmatpush1.msra.mxu0 0.0
        %803 = vmatprep.subr.mxu0 0.0
        %804 = vmatpush1.msra.mxu0 0.0
        %805 = vmatprep.subr.mxu0 0.0
        %806 = vmatpush1.msra.mxu0 0.0
        %807 = vmatprep.subr.mxu0 0.0
        %808 = vmatpush1.msra.mxu0 0.0
        %809 = vmatprep.subr.mxu0 0.0
        %810 = vmatpush1.msra.mxu0 0.0
        %811 = vmatprep.subr.mxu0 0.0
        %812 = vmatpush1.msra.mxu0 0.0
        %813 = vmatprep.subr.mxu0 0.0
        %814 = vmatpush1.msra.mxu0 0.0
        %815 = vmatprep.subr.mxu0 0.0
        %816 = vmatpush1.msra.mxu0 %v780
        %817 = vmatprep.subr.mxu0 0.0
        %818 = vmatpush2.msra.mxu0 0.0
        %819 = vmatprep.subr.mxu0 0.0
        %820 = vmatpush2.msra.mxu0 0.0
        %821 = vmatprep.subr.mxu0 0.0
        %822 = vmatpush2.msra.mxu0 0.0
        %823 = vmatprep.subr.mxu0 0.0
        %824 = vmatpush2.msra.mxu0 0.0
        %825 = vmatprep.subr.mxu0 0.0
        %826 = vmatpush2.msra.mxu0 0.0
        %827 = vmatprep.subr.mxu0 0.0
        %828 = vmatpush2.msra.mxu0 0.0
        %829 = vmatprep.subr.mxu0 0.0
        %830 = vmatpush2.msra.mxu0 0.0
        %831 = vmatprep.subr.mxu0 0.0
        %832 = vmatpush2.msra.mxu0 0.0
        %833 = vmatprep.subr.mxu0 0.0
        %834 = vmatpush2.msra.mxu0 0.0
        %835 = vmatprep.subr.mxu0 0.0
        %836 = vmatpush2.msra.mxu0 0.0
        %837 = vmatprep.subr.mxu0 0.0
        %838 = vmatpush2.msra.mxu0 0.0
        %839 = vmatprep.subr.mxu0 0.0
        %840 = vmatpush2.msra.mxu0 0.0
        %841 = vmatprep.subr.mxu0 0.0
        %842 = vmatpush2.msra.mxu0 0.0
        %843 = vmatprep.subr.mxu0 0.0
        %844 = vmatpush2.msra.mxu0 0.0
        %845 = vmatprep.subr.mxu0 0.0
        %846 = vmatpush2.msra.mxu0 0.0
        %847 = vmatprep.subr.mxu0 0.0
        %848 = vmatpush2.msra.mxu0 0.0
        %849 = vmatprep.mubr.f32.mxu0 0.0
        %850 = vmatmul.mubr.f32.gmra.mxu0 %v783
        %v851 = vpop.f32.mrf.mxu0
        %v852 = vadd.f32 0.0, %v851
        %v853 = vpop.f32.mrf.mxu0
        %854 = vdwg.mxu0
        %855 = vrot.lane.b32.xlu0 %v357, 80
        %v856 = vpop.permute.xlu0 %855
        %857 = vrot.lane.b32.xlu0 %v357, 16
        %v858 = vpop.permute.xlu0 %857
        %v859 = vsel %vm364, %v856, 0
        %v861 = vsel %vm364, %v858, 0
        %863 = vmatprep.subr.mxu0 0.0
        %864 = vmatpush1.xpose.msra.mxu0 0.0
        %865 = vmatprep.subr.mxu0 0.0
        %866 = vmatpush1.xpose.msra.mxu0 0.0
        %867 = vmatprep.subr.mxu0 0.0
        %868 = vmatpush1.xpose.msra.mxu0 0.0
        %869 = vmatprep.subr.mxu0 0.0
        %870 = vmatpush1.xpose.msra.mxu0 0.0
        %871 = vmatprep.subr.mxu0 0.0
        %872 = vmatpush1.xpose.msra.mxu0 0.0
        %873 = vmatprep.subr.mxu0 0.0
        %874 = vmatpush1.xpose.msra.mxu0 0.0
        %875 = vmatprep.subr.mxu0 0.0
        %876 = vmatpush1.xpose.msra.mxu0 0.0
        %877 = vmatprep.subr.mxu0 0.0
        %878 = vmatpush1.xpose.msra.mxu0 0.0
        %879 = vmatprep.subr.mxu0 0.0
        %880 = vmatpush1.xpose.msra.mxu0 0.0
        %881 = vmatprep.subr.mxu0 0.0
        %882 = vmatpush1.xpose.msra.mxu0 0.0
        %883 = vmatprep.subr.mxu0 0.0
        %884 = vmatpush1.xpose.msra.mxu0 0.0
        %885 = vmatprep.subr.mxu0 0.0
        %886 = vmatpush1.xpose.msra.mxu0 0.0
        %887 = vmatprep.subr.mxu0 0.0
        %888 = vmatpush1.xpose.msra.mxu0 0.0
        %889 = vmatprep.subr.mxu0 0.0
        %890 = vmatpush1.xpose.msra.mxu0 0.0
        %891 = vmatprep.subr.mxu0 0.0
        %892 = vmatpush1.xpose.msra.mxu0 0.0
        %893 = vmatprep.subr.mxu0 0.0
        %894 = vmatpush1.xpose.msra.mxu0 %v861
        %895 = vmatprep.subr.mxu0 0.0
        %896 = vmatpush2.xpose.msra.mxu0 0.0
        %897 = vmatprep.subr.mxu0 0.0
        %898 = vmatpush2.xpose.msra.mxu0 0.0
        %899 = vmatprep.subr.mxu0 0.0
        %900 = vmatpush2.xpose.msra.mxu0 0.0
        %901 = vmatprep.subr.mxu0 0.0
        %902 = vmatpush2.xpose.msra.mxu0 0.0
        %903 = vmatprep.subr.mxu0 0.0
        %904 = vmatpush2.xpose.msra.mxu0 0.0
        %905 = vmatprep.subr.mxu0 0.0
        %906 = vmatpush2.xpose.msra.mxu0 0.0
        %907 = vmatprep.subr.mxu0 0.0
        %908 = vmatpush2.xpose.msra.mxu0 0.0
        %909 = vmatprep.subr.mxu0 0.0
        %910 = vmatpush2.xpose.msra.mxu0 0.0
        %911 = vmatprep.subr.mxu0 0.0
        %912 = vmatpush2.xpose.msra.mxu0 0.0
        %913 = vmatprep.subr.mxu0 0.0
        %914 = vmatpush2.xpose.msra.mxu0 0.0
        %915 = vmatprep.subr.mxu0 0.0
        %916 = vmatpush2.xpose.msra.mxu0 0.0
        %917 = vmatprep.subr.mxu0 0.0
        %918 = vmatpush2.xpose.msra.mxu0 0.0
        %919 = vmatprep.subr.mxu0 0.0
        %920 = vmatpush2.xpose.msra.mxu0 0.0
        %921 = vmatprep.subr.mxu0 0.0
        %922 = vmatpush2.xpose.msra.mxu0 0.0
        %923 = vmatprep.subr.mxu0 0.0
        %924 = vmatpush2.xpose.msra.mxu0 0.0
        %925 = vmatprep.subr.mxu0 0.0
        %926 = vmatpush2.xpose.msra.mxu0 0.0
        %927 = vmatprep.mubr.f32.mxu0 0.0
        %928 = vmatmul.mubr.f32.gmra.mxu0 %v859
        %v929 = vpop.f32.mrf.mxu0
        %v930 = vadd.f32 0.0, %v929
        %v931 = vpop.f32.mrf.mxu0
        %932 = vdwg.mxu0
        %v933 = vsel %vm439, %v930, -inf
        %934 = vmax.xlane.f32.xlu0 %v933
        %v935 = vpop.xlane.xlu0 %934
        %v936 = vsub.f32 %v930, %v935
        %v937 = vmul.f32 %v936, 1.442695
        %v938 = vpow.pop %v937
        %v939 = vsel %vm439, %v938, 0.0
        %940 = vadd.xlane.f32.xlu0 %v939
        %v941 = vpop.xlane.xlu0 %940
        %v942 = vrcp.pop %v941
        %v943 = vmul.f32 %v938, %v942
        %944 = vrot.lane.b32.xlu0 %v359, 80
        %v945 = vpop.permute.xlu0 %944
        %v948 = vsel %vm439, %v943, 0
        %950 = vmatprep.subr.mxu0 0.0
        %951 = vmatpush1.msra.mxu0 0.0
        %952 = vmatprep.subr.mxu0 0.0
        %953 = vmatpush1.msra.mxu0 0.0
        %954 = vmatprep.subr.mxu0 0.0
        %955 = vmatpush1.msra.mxu0 0.0
        %956 = vmatprep.subr.mxu0 0.0
        %957 = vmatpush1.msra.mxu0 0.0
        %958 = vmatprep.subr.mxu0 0.0
        %959 = vmatpush1.msra.mxu0 0.0
        %960 = vmatprep.subr.mxu0 0.0
        %961 = vmatpush1.msra.mxu0 0.0
        %962 = vmatprep.subr.mxu0 0.0
        %963 = vmatpush1.msra.mxu0 0.0
        %964 = vmatprep.subr.mxu0 0.0
        %965 = vmatpush1.msra.mxu0 0.0
        %966 = vmatprep.subr.mxu0 0.0
        %967 = vmatpush1.msra.mxu0 0.0
        %968 = vmatprep.subr.mxu0 0.0
        %969 = vmatpush1.msra.mxu0 0.0
        %970 = vmatprep.subr.mxu0 0.0
        %971 = vmatpush1.msra.mxu0 0.0
        %972 = vmatprep.subr.mxu0 0.0
        %973 = vmatpush1.msra.mxu0 0.0
        %974 = vmatprep.subr.mxu0 0.0
        %975 = vmatpush1.msra.mxu0 0.0
        %976 = vmatprep.subr.mxu0 0.0
        %977 = vmatpush1.msra.mxu0 0.0
        %978 = vmatprep.subr.mxu0 0.0
        %979 = vmatpush1.msra.mxu0 0.0
        %980 = vmatprep.subr.mxu0 0.0
        %981 = vmatpush1.msra.mxu0 %v945
        %982 = vmatprep.subr.mxu0 0.0
        %983 = vmatpush2.msra.mxu0 0.0
        %984 = vmatprep.subr.mxu0 0.0
        %985 = vmatpush2.msra.mxu0 0.0
        %986 = vmatprep.subr.mxu0 0.0
        %987 = vmatpush2.msra.mxu0 0.0
        %988 = vmatprep.subr.mxu0 0.0
        %989 = vmatpush2.msra.mxu0 0.0
        %990 = vmatprep.subr.mxu0 0.0
        %991 = vmatpush2.msra.mxu0 0.0
        %992 = vmatprep.subr.mxu0 0.0
        %993 = vmatpush2.msra.mxu0 0.0
        %994 = vmatprep.subr.mxu0 0.0
        %995 = vmatpush2.msra.mxu0 0.0
        %996 = vmatprep.subr.mxu0 0.0
        %997 = vmatpush2.msra.mxu0 0.0
        %998 = vmatprep.subr.mxu0 0.0
        %999 = vmatpush2.msra.mxu0 0.0
        %1000 = vmatprep.subr.mxu0 0.0
        %1001 = vmatpush2.msra.mxu0 0.0
        %1002 = vmatprep.subr.mxu0 0.0
        %1003 = vmatpush2.msra.mxu0 0.0
        %1004 = vmatprep.subr.mxu0 0.0
        %1005 = vmatpush2.msra.mxu0 0.0
        %1006 = vmatprep.subr.mxu0 0.0
        %1007 = vmatpush2.msra.mxu0 0.0
        %1008 = vmatprep.subr.mxu0 0.0
        %1009 = vmatpush2.msra.mxu0 0.0
        %1010 = vmatprep.subr.mxu0 0.0
        %1011 = vmatpush2.msra.mxu0 0.0
        %1012 = vmatprep.subr.mxu0 0.0
        %1013 = vmatpush2.msra.mxu0 0.0
        %1014 = vmatprep.mubr.f32.mxu0 0.0
        %1015 = vmatmul.mubr.f32.gmra.mxu0 %v948
        %v1016 = vpop.f32.mrf.mxu0
        %v1017 = vadd.f32 0.0, %v1016
        %v1018 = vpop.f32.mrf.mxu0
        %1019 = vdwg.mxu0
        %1021 = vrot.lane.b32.xlu0 %v687, 16
        %v1022 = vpop.permute.xlu0 %1021
        %1025 = vrot.lane.b32.xlu0 %v852, 32
        %v1026 = vpop.permute.xlu0 %1025
        %1029 = vrot.lane.b32.xlu0 %v1017, 48
        %v1030 = vpop.permute.xlu0 %1029
        %v1032 = vsel %vm364, %v521, %v1022
        %v1033 = vsel %vm248, %v1032, %v1026
        %vm1034 = vcmask 392192
        %v1035 = vsel %vm1034, %v1033, %v1030
        %v1036 = vld [vmem:[%s4] sm:$0xff]
        %v1037 = vld [vmem:[%s4 + $0x8] sm:$0xff]
        %v1038 = vld [vmem:[%s4 + $0x10] sm:$0xff]
        %v1039 = vld [vmem:[%s4 + $0x18] sm:$0xff]
        %v1040 = vld [vmem:[%s4 + $0x20] sm:$0xff]
        %v1041 = vld [vmem:[%s4 + $0x28] sm:$0xff]
        %v1042 = vld [vmem:[%s4 + $0x30] sm:$0xff]
        %v1043 = vld [vmem:[%s4 + $0x38] sm:$0xff]
        %v1044 = vld [vmem:[%s5] sm:$0x1]
        %v1046 = vlaneseq
        %v1047 = vshrl.u32 %v1046, 7
        %v1048 = vsub.s32 0, %v1047
        %v1049 = vrot.slane %v1044, %v1048
        %vm1051 = vcmask 523264
        %v1053 = vsel %vm1051, %v1035, 0
        %1055 = vmatprep.subr.mxu0 0.0
        %1056 = vmatpush1.msra.mxu0 0.0
        %1057 = vmatprep.subr.mxu0 0.0
        %1058 = vmatpush1.msra.mxu0 0.0
        %1059 = vmatprep.subr.mxu0 0.0
        %1060 = vmatpush1.msra.mxu0 0.0
        %1061 = vmatprep.subr.mxu0 0.0
        %1062 = vmatpush1.msra.mxu0 0.0
        %1063 = vmatprep.subr.mxu0 0.0
        %1064 = vmatpush1.msra.mxu0 0.0
        %1065 = vmatprep.subr.mxu0 0.0
        %1066 = vmatpush1.msra.mxu0 0.0
        %1067 = vmatprep.subr.mxu0 0.0
        %1068 = vmatpush1.msra.mxu0 0.0
        %1069 = vmatprep.subr.mxu0 0.0
        %1070 = vmatpush1.msra.mxu0 0.0
        %1071 = vmatprep.subr.mxu0 0.0
        %1072 = vmatpush1.msra.mxu0 %v1043
        %1073 = vmatprep.subr.mxu0 0.0
        %1074 = vmatpush1.msra.mxu0 %v1042
        %1075 = vmatprep.subr.mxu0 0.0
        %1076 = vmatpush1.msra.mxu0 %v1041
        %1077 = vmatprep.subr.mxu0 0.0
        %1078 = vmatpush1.msra.mxu0 %v1040
        %1079 = vmatprep.subr.mxu0 0.0
        %1080 = vmatpush1.msra.mxu0 %v1039
        %1081 = vmatprep.subr.mxu0 0.0
        %1082 = vmatpush1.msra.mxu0 %v1038
        %1083 = vmatprep.subr.mxu0 0.0
        %1084 = vmatpush1.msra.mxu0 %v1037
        %1085 = vmatprep.subr.mxu0 0.0
        %1086 = vmatpush1.msra.mxu0 %v1036
        %1087 = vmatprep.subr.mxu0 0.0
        %1088 = vmatpush2.msra.mxu0 0.0
        %1089 = vmatprep.subr.mxu0 0.0
        %1090 = vmatpush2.msra.mxu0 0.0
        %1091 = vmatprep.subr.mxu0 0.0
        %1092 = vmatpush2.msra.mxu0 0.0
        %1093 = vmatprep.subr.mxu0 0.0
        %1094 = vmatpush2.msra.mxu0 0.0
        %1095 = vmatprep.subr.mxu0 0.0
        %1096 = vmatpush2.msra.mxu0 0.0
        %1097 = vmatprep.subr.mxu0 0.0
        %1098 = vmatpush2.msra.mxu0 0.0
        %1099 = vmatprep.subr.mxu0 0.0
        %1100 = vmatpush2.msra.mxu0 0.0
        %1101 = vmatprep.subr.mxu0 0.0
        %1102 = vmatpush2.msra.mxu0 0.0
        %1103 = vmatprep.subr.mxu0 0.0
        %1104 = vmatpush2.msra.mxu0 0.0
        %1105 = vmatprep.subr.mxu0 0.0
        %1106 = vmatpush2.msra.mxu0 0.0
        %1107 = vmatprep.subr.mxu0 0.0
        %1108 = vmatpush2.msra.mxu0 0.0
        %1109 = vmatprep.subr.mxu0 0.0
        %1110 = vmatpush2.msra.mxu0 0.0
        %1111 = vmatprep.subr.mxu0 0.0
        %1112 = vmatpush2.msra.mxu0 0.0
        %1113 = vmatprep.subr.mxu0 0.0
        %1114 = vmatpush2.msra.mxu0 0.0
        %1115 = vmatprep.subr.mxu0 0.0
        %1116 = vmatpush2.msra.mxu0 0.0
        %1117 = vmatprep.subr.mxu0 0.0
        %1118 = vmatpush2.msra.mxu0 0.0
        %1119 = vmatprep.mubr.f32.mxu0 0.0
        %1120 = vmatmul.mubr.f32.gmra.mxu0 %v1053
        %v1121 = vpop.f32.mrf.mxu0
        %v1122 = vadd.f32 %v1049, %v1121
        %v1123 = vpop.f32.mrf.mxu0
        %1124 = vdwg.mxu0
        %1125 = vst.msk [vmem:[%s242] sm:$0xff] %vm248, %v1122
        %s1126 = sand.u32 %s159, 1
        %s1127 = scalar_lea.sflag [#allocation3], %s1126
        %s1128 = sand.u32 %s159, 1
        %s1129 = smul.addr %s1128, 8
        %s1130 = scalar_lea.vmem [#allocation2], %s1129
        // Predicated region
        $region45: #{tpu_custom_call.1} parent=43 // pred_check
          %p1131 = pneg %p169
        $region46: #{tpu_custom_call.1} parent=43 // pred_check_branch
          %1133 = sbr.rel (%p1131) target = $region48
        $region47: #{tpu_custom_call.1} parent=43 // pred_region
          %s1135 = ssub.s32 128, 128
          %1136 = vsyncadd %s1127, %s1135
          %s1137 = smul.addr %s20, 128
          %s1138 = scalar_lea.hbm %s6, %s1137
          %s1140 = sshll.u32 %s1130, 4
          %s1141 = int_to_ptr.vmem [resolvable:$true] %s1140
          %1143 = dma.vmem_to_hbm [thread:$0]  %s1141, 128, %s1138, %s1127
        $region48: #{tpu_custom_call.1} parent=43 // pred_fallthru
          _
      $region44: #{tpu_custom_call.1} parent=5 // pred_fallthru
        _
      %p1144 = scmp.le.s32.totalorder 2, %s15
      // Predicated region
      $region49: #{tpu_custom_call.1} parent=5 // pred_check
        %p1145 = pneg %p1144
      $region50: #{tpu_custom_call.1} parent=5 // pred_check_branch
        %1147 = sbr.rel (%p1145) target = $region52
      $region51: #{tpu_custom_call.1} parent=5 // pred_region
        %s1148 = ssub.s32 %s15, 2
        // Predicated region
        $region53: #{tpu_custom_call.1} parent=51 // pred_check
          %p1149 = pneg %p175
        $region54: #{tpu_custom_call.1} parent=51 // pred_check_branch
          %1151 = sbr.rel (%p1149) target = $region56
        $region55: #{tpu_custom_call.1} parent=51 // pred_region
          %s1152 = sand.u32 %s160, 1
          %s1153 = scalar_lea.sflag [#allocation3], %s1152
          %s1154 = sand.u32 %s160, 1
          %s1155 = smul.addr %s1154, 8
          %s1156 = scalar_lea.vmem [#allocation2], %s1155
          %1157 = dma.done %s1153, 128
        $region56: #{tpu_custom_call.1} parent=51 // pred_fallthru
          _
      $region52: #{tpu_custom_call.1} parent=5 // pred_fallthru
        _
    $region6: #{tpu_custom_call.1} parent=1 // loop_footer
      %s19 = sadd.s32 1, %s15
    $region7: #{tpu_custom_call.1} parent=1 // loop_footer_branch
      %14 = sbr.rel target = $region3
    $region8: #{tpu_custom_call.1} parent=1 // loop_exit
      _
    %1158 = vsyncpa [#allocation3], 1
    %s1159 = scalar_lea.sflag [#allocation3], 1
    %1160 = vsyncpa %s1159, 1

</llo_original>
